<compile_context>
chip_gen: v5e
topology: v5e:2x2
jax: 0.10.0
libtpu: 0.0.40
codegen_flags: <defaults>
</compile_context>

<pallas_src>
import functools

import jax
import jax.numpy as jnp
from jax import lax
from jax.experimental import pallas as pl
from jax.experimental.pallas import tpu as pltpu

KSIZE = 7
PAD = KSIZE // 2


def _round_up(x, m):
    return ((x + m - 1) // m) * m


# --------------------------------------------------------------------------
# Kernel 1: fused channel mean + max reduction (lane-dense, C-tiled).
# --------------------------------------------------------------------------
def _channel_reduce_kernel(x_ref, o_ref, sum_ref, max_ref, *,
                           c_total, cb, sub, n_c, unroll):
    # x_ref  : (1, cb, hwb)  one channel-chunk of one batch / spatial block
    # o_ref  : (1, 2, hwb)   f32 [mean, max] over channels (written at last c)
    # sum_ref/max_ref : (sub, hwb) f32 running accumulators (persist over c)
    c_idx = pl.program_id(2)

    @pl.when(c_idx == 0)
    def _():
        sum_ref[...] = jnp.zeros_like(sum_ref)
        max_ref[...] = jnp.full_like(max_ref, -jnp.inf)

    def accumulate(n_full_slabs, tail_rows):
        # Running accumulators are carried in registers through the loop
        # (read/written to scratch only once per grid step).
        def body(i, carry):
            s, m = carry
            off = pl.multiple_of(i * sub, sub)
            slab = x_ref[0, pl.ds(off, sub), :].astype(jnp.float32)
            return s + slab, jnp.maximum(m, slab)

        s, m = sum_ref[...], max_ref[...]
        if n_full_slabs > 0:
            u = True if n_full_slabs <= 8 else unroll
            s, m = lax.fori_loop(0, n_full_slabs, body, (s, m), unroll=u)
        if tail_rows:
            # Ragged channel tail: mask invalid rows (static mask shape).
            off = pl.multiple_of(n_full_slabs * sub, sub)
            slab = x_ref[0, pl.ds(off, sub), :].astype(jnp.float32)
            rows = lax.broadcasted_iota(jnp.int32, slab.shape, 0)
            keep = rows < tail_rows
            s = s + jnp.where(keep, slab, 0.0)
            m = jnp.maximum(m, jnp.where(keep, slab, -jnp.inf))
        sum_ref[...] = s
        max_ref[...] = m

    tail_c = c_total - (n_c - 1) * cb      # valid channel rows in last c block
    if tail_c == cb:                       # every block full: single fast path
        accumulate(cb // sub, 0)
    else:
        if n_c > 1:
            @pl.when(c_idx < n_c - 1)
            def _():
                accumulate(cb // sub, 0)

        @pl.when(c_idx == n_c - 1)
        def _():
            accumulate(tail_c // sub, tail_c % sub)

    @pl.when(c_idx == n_c - 1)
    def _():
        mean = jnp.sum(sum_ref[...], axis=0, keepdims=True) * (1.0 / c_total)
        mx = jnp.max(max_ref[...], axis=0, keepdims=True)
        o_ref[0, 0:1, :] = mean
        o_ref[0, 1:2, :] = mx


# --------------------------------------------------------------------------
# Kernel 2: zero-pad + 7x7 conv (2 -> 1 channels, no bias) + sigmoid.
# --------------------------------------------------------------------------
def _conv_sigmoid_kernel(w_ref, r_ref, o_ref, pad_ref):
    # w_ref  : SMEM (2*7*7,) f32   flattened conv weight (OIHW order)
    # r_ref  : VMEM (1, 2, H, W)   f32 [mean, max] maps for one batch element
    # o_ref  : VMEM (1, 1, H, W)   sigmoid(conv(...))
    # pad_ref: VMEM (2, H+6, W+6)  zero-padded maps
    _, _, H, W = r_ref.shape
    Hp, Wp = H + 2 * PAD, W + 2 * PAD

    maps = r_ref[0]                                    # (2, H, W) f32
    # Zero only the PAD-wide border strips; the interior is fully overwritten
    # right below.  (Re-done every grid step: scratch is per-core on v7x.)
    for c in range(2):
        pad_ref[c, 0:PAD, :] = jnp.zeros((PAD, Wp), jnp.float32)
        pad_ref[c, Hp - PAD:Hp, :] = jnp.zeros((PAD, Wp), jnp.float32)
        pad_ref[c, :, 0:PAD] = jnp.zeros((Hp, PAD), jnp.float32)
        pad_ref[c, :, Wp - PAD:Wp] = jnp.zeros((Hp, PAD), jnp.float32)
        pad_ref[c, PAD:PAD + H, PAD:PAD + W] = maps[c]

    # Hoist the 98 scalar weights out of the MAC loop (SMEM reads).
    w = [w_ref[i] for i in range(2 * KSIZE * KSIZE)]

    # 4 independent accumulators so the 98-term FMA chain does not serialize.
    accs = [jnp.zeros((H, W), jnp.float32) for _ in range(4)]
    t = 0
    for c in range(2):
        for dw in range(KSIZE):
            # One live lane-offset column at a time (reused across 7 dh taps).
            col = pad_ref[c, :, dw:dw + W]             # (H + 2*PAD, W)
            for dh in range(KSIZE):
                wgt = w[c * KSIZE * KSIZE + dh * KSIZE + dw]
                accs[t & 3] = accs[t & 3] + wgt * col[dh:dh + H, :]
                t += 1
    acc = (accs[0] + accs[1]) + (accs[2] + accs[3])
    o_ref[0, 0, :, :] = jax.nn.sigmoid(acc).astype(o_ref.dtype)


# --------------------------------------------------------------------------
# Block-size selection.
# --------------------------------------------------------------------------
def _pick_blocks(n, c, hw, elem_bytes):
    """Returns (hwb, n_hw, cb, sub)."""
    # ---- spatial (lane) block: cap at 1024 lanes so accumulators + one slab
    # stay ~<= 40 vregs (no spills); 512-1024 f32 lanes already reach ~85% of
    # the HBM roofline.
    cap = 1024
    hwb = hw if hw <= cap else cap
    n_hw = -(-hw // hwb)
    # v7x megacore balance: when N alone cannot provide >= 2 balanced parallel
    # blocks, split H*W into an even number of near-equal 128-aligned blocks.
    # (No-op for single-TensorCore v5e/v6e.)
    if n == 1 and n_hw % 2 == 1 and hw >= 1024:
        target = n_hw + 1
        hwb = _round_up(-(-hw // target), 128)
        n_hw = -(-hw // hwb)

    # ---- channel (sublane) block: whole packed vregs per slab (dtype-aware).
    sub = max(8, 32 // elem_bytes)        # 8 f32 / 16 bf16 / 32 int8 sublanes
    if c <= sub:
        return hwb, n_hw, c, c            # single full-C block, one slab
    # ~4 MiB per x block: double-buffered input stays far below the 32 MiB
    # vmem limit on every generation (v7x physical VMEM is 64 MiB).
    budget = 4 * 1024 * 1024
    lane_bytes = max(hwb, 128) * elem_bytes           # lanes pad to 128
    cb = (budget // lane_bytes // sub) * sub          # multiple of sub
    cb = max(sub, min(cb, 1024, _round_up(c, sub)))
    return hwb, n_hw, cb, sub


# --------------------------------------------------------------------------
# Wrapper.
# --------------------------------------------------------------------------
def spatial_attention(x, conv_weight):
    """x: (N, C, H, W); conv_weight: (1, 2, 7, 7) -> (N, 1, H, W)."""
    N, C, H, W = x.shape
    HW = H * W
    x_flat = x.reshape(N, C, HW)                      # lane-dense spatial dim
    w_flat = conv_weight.reshape(-1).astype(jnp.float32)

    elem_bytes = jnp.dtype(x.dtype).itemsize
    hwb, n_hw, cb, sub = _pick_blocks(N, C, HW, elem_bytes)
    n_c = -(-C // cb)
    # fori_loop unroll: modest (2) when a slab is wide (bf16 -> 16-row f32
    # slabs), 4 otherwise; short loops fully unroll inside the kernel.
    slab_vregs = (sub * max(hwb, 128) * 4) // 4096
    unroll = 2 if slab_vregs > 8 else 4

    # ---- Kernel 1: fused channel mean + max (memory-bound part). ----
    # TODO(synk): on v7x specifically, pipeline_mode=pl.Buffered(3) with an
    # ~8 MiB block would hide more per-step overhead (re-derive vs 64 MiB VMEM).
    red = pl.pallas_call(
        functools.partial(_channel_reduce_kernel, c_total=C, cb=cb, sub=sub,
                          n_c=n_c, unroll=unroll),
        out_shape=jax.ShapeDtypeStruct((N, 2, HW), jnp.float32),
        grid_spec=pltpu.PrefetchScalarGridSpec(
            num_scalar_prefetch=0,
            grid=(N, n_hw, n_c),
            in_specs=[pl.BlockSpec((1, cb, hwb), lambda n, h, c: (n, c, h))],
            out_specs=pl.BlockSpec((1, 2, hwb), lambda n, h, c: (n, 0, h)),
            scratch_shapes=[pltpu.VMEM((sub, hwb), jnp.float32),
                            pltpu.VMEM((sub, hwb), jnp.float32)]),
        compiler_params=pltpu.CompilerParams(
            dimension_semantics=("parallel", "parallel", "arbitrary"),
            vmem_limit_bytes=32 * 1024 * 1024),
    )(x_flat)

    # Metadata-only reshape back to NCHW for the tiny conv kernel.
    red = red.reshape(N, 2, H, W)

    # ---- Kernel 2: 7x7 conv + sigmoid (tiny per-batch epilogue). ----
    out = pl.pallas_call(
        _conv_sigmoid_kernel,
        out_shape=jax.ShapeDtypeStruct((N, 1, H, W), x.dtype),
        grid_spec=pltpu.PrefetchScalarGridSpec(
            num_scalar_prefetch=0,
            grid=(N,),
            in_specs=[
                pl.BlockSpec(memory_space=pltpu.SMEM),                # weights
                pl.BlockSpec((1, 2, H, W), lambda n: (n, 0, 0, 0)),   # maps
            ],
            out_specs=pl.BlockSpec((1, 1, H, W), lambda n: (n, 0, 0, 0)),
            scratch_shapes=[pltpu.VMEM((2, H + 2 * PAD, W + 2 * PAD),
                                       jnp.float32)]),
        compiler_params=pltpu.CompilerParams(
            dimension_semantics=("parallel",)),
    )(w_flat, red)
    return out


# --------------------------------------------------------------------------
# Pure-JAX reference (mirrors the PyTorch forward).
# --------------------------------------------------------------------------
def reference_spatial_attention(x, conv_weight):
    avg = jnp.mean(x, axis=1, keepdims=True)
    mx = jnp.max(x, axis=1, keepdims=True)
    cat = jnp.concatenate([avg, mx], axis=1)           # (N, 2, H, W)
    out = jax.lax.conv_general_dilated(
        cat, conv_weight,
        window_strides=(1, 1),
        padding=[(PAD, PAD), (PAD, PAD)],
        dimension_numbers=("NCHW", "OIHW", "NCHW"))
    return jax.nn.sigmoid(out)


if __name__ == "__main__":
    key = jax.random.PRNGKey(0)
    kx, kw = jax.random.split(key)

    N, C, H, W = 2, 4, 16, 16
    x = jax.random.normal(kx, (N, C, H, W), dtype=jnp.float32)
    # Deterministic synthetic init for conv1 weight (nn.Conv2d(2, 1, 7, bias=False)).
    fan_in = 2 * KSIZE * KSIZE
    conv_weight = (jax.random.normal(kw, (1, 2, KSIZE, KSIZE), dtype=jnp.float32)
                   / jnp.sqrt(fan_in))

    out = jax.block_until_ready(spatial_attention(x, conv_weight))
    ref = reference_spatial_attention(x, conv_weight)

    assert out.shape == (N, 1, H, W), out.shape
    assert jnp.allclose(out, ref, atol=1e-5, rtol=1e-5), (
        float(jnp.max(jnp.abs(out - ref))))

    print("KERNEL_OK")
</pallas_src>

<mosaic_0001>
module attributes {stable_mosaic.version = 11 : i64} {
  func.func @_channel_reduce_kernel(%arg0: i32, %arg1: i32, %arg2: i32, %arg3: memref<1x4x256xf32, #tpu.memory_space<vmem>>, %arg4: memref<1x2x256xf32, #tpu.memory_space<vmem>>, %arg5: memref<4x256xf32, #tpu.memory_space<vmem>>, %arg6: memref<4x256xf32, #tpu.memory_space<vmem>>) attributes {dimension_semantics = [#tpu.dimension_semantics<parallel>, #tpu.dimension_semantics<parallel>, #tpu.dimension_semantics<arbitrary>], iteration_bounds = array<i64: 2, 1, 1>, scalar_prefetch = 0 : i64, scratch_operands = 2 : i64, tpu.core_type = #tpu.core_type<tc>, window_params = [{transform_indices = @transform_0, window_bounds = array<i64: 1, 4, 256>}, {transform_indices = @transform_1, window_bounds = array<i64: 1, 2, 256>}]} {
    %c0_i32 = arith.constant 0 : i32
    %0 = arith.cmpi eq, %arg2, %c0_i32 : i32
    %1 = arith.extui %0 : i1 to i32
    %c0_i32_0 = arith.constant 0 : i32
    %2 = arith.cmpi ne, %1, %c0_i32_0 : i32
    scf.if %2 {
      %cst = arith.constant 0.000000e+00 : f32
      %17 = vector.broadcast %cst : f32 to vector<4x256xf32>
      %c0_13 = arith.constant 0 : index
      %c0_14 = arith.constant 0 : index
      %18 = vector.load %arg5[%c0_13, %c0_14] : memref<4x256xf32, #tpu.memory_space<vmem>>, vector<4x256xf32>
      tpu.vector_store %arg5[%c0_13, %c0_14], %17 {strides = array<i32>} : memref<4x256xf32, #tpu.memory_space<vmem>>, vector<4x256xf32>,
      %cst_15 = arith.constant 0xFF800000 : f32
      %19 = vector.broadcast %cst_15 : f32 to vector<4x256xf32>
      %c0_16 = arith.constant 0 : index
      %c0_17 = arith.constant 0 : index
      %20 = vector.load %arg6[%c0_16, %c0_17] : memref<4x256xf32, #tpu.memory_space<vmem>>, vector<4x256xf32>
      tpu.vector_store %arg6[%c0_16, %c0_17], %19 {strides = array<i32>} : memref<4x256xf32, #tpu.memory_space<vmem>>, vector<4x256xf32>,
    } else {
    }
    %c0 = arith.constant 0 : index
    %c0_1 = arith.constant 0 : index
    %3 = vector.load %arg5[%c0, %c0_1] : memref<4x256xf32, #tpu.memory_space<vmem>>, vector<4x256xf32>
    %c0_2 = arith.constant 0 : index
    %c0_3 = arith.constant 0 : index
    %4 = vector.load %arg6[%c0_2, %c0_3] : memref<4x256xf32, #tpu.memory_space<vmem>>, vector<4x256xf32>
    %c0_i32_4 = arith.constant 0 : i32
    %c4_i32 = arith.constant 4 : i32
    %5 = arith.muli %c0_i32_4, %c4_i32 : i32
    %6 = tpu.assume_multiple %5, 4 : i32
    %c0_5 = arith.constant 0 : index
    %7 = arith.index_cast %6 : i32 to index
    %c0_6 = arith.constant 0 : index
    %8 = vector.load %arg3[%c0_5, %7, %c0_6] : memref<1x4x256xf32, #tpu.memory_space<vmem>>, vector<1x4x256xf32>
    %9 = vector.shape_cast %8 : vector<1x4x256xf32> to vector<4x256xf32>
    %10 = arith.addf %3, %9 : vector<4x256xf32>
    %11 = arith.maximumf %4, %9 : vector<4x256xf32>
    %c1_i32 = arith.constant 1 : i32
    %c0_7 = arith.constant 0 : index
    %c0_8 = arith.constant 0 : index
    %12 = vector.load %arg5[%c0_7, %c0_8] : memref<4x256xf32, #tpu.memory_space<vmem>>, vector<4x256xf32>
    tpu.vector_store %arg5[%c0_7, %c0_8], %10 {strides = array<i32>} : memref<4x256xf32, #tpu.memory_space<vmem>>, vector<4x256xf32>,
    %c0_9 = arith.constant 0 : index
    %c0_10 = arith.constant 0 : index
    %13 = vector.load %arg6[%c0_9, %c0_10] : memref<4x256xf32, #tpu.memory_space<vmem>>, vector<4x256xf32>
    tpu.vector_store %arg6[%c0_9, %c0_10], %11 {strides = array<i32>} : memref<4x256xf32, #tpu.memory_space<vmem>>, vector<4x256xf32>,
    %c0_i32_11 = arith.constant 0 : i32
    %14 = arith.cmpi eq, %arg2, %c0_i32_11 : i32
    %15 = arith.extui %14 : i1 to i32
    %c0_i32_12 = arith.constant 0 : i32
    %16 = arith.cmpi ne, %15, %c0_i32_12 : i32
    scf.if %16 {
      %c0_13 = arith.constant 0 : index
      %c0_14 = arith.constant 0 : index
      %17 = vector.load %arg5[%c0_13, %c0_14] : memref<4x256xf32, #tpu.memory_space<vmem>>, vector<4x256xf32>
      %cst = arith.constant dense<0.000000e+00> : vector<256xf32>
      %18 = vector.multi_reduction <add>, %17, %cst [0] : vector<4x256xf32> to vector<256xf32>
      %19 = vector.shape_cast %18 : vector<256xf32> to vector<1x256xf32>
      %cst_15 = arith.constant 2.500000e-01 : f32
      %20 = vector.broadcast %cst_15 : f32 to vector<1x256xf32>
      %21 = arith.mulf %19, %20 : vector<1x256xf32>
      %c0_16 = arith.constant 0 : index
      %c0_17 = arith.constant 0 : index
      %22 = vector.load %arg6[%c0_16, %c0_17] : memref<4x256xf32, #tpu.memory_space<vmem>>, vector<4x256xf32>
      %cst_18 = arith.constant dense<0xFF800000> : vector<256xf32>
      %23 = vector.multi_reduction <maximumf>, %22, %cst_18 [0] : vector<4x256xf32> to vector<256xf32>
      %24 = vector.shape_cast %23 : vector<256xf32> to vector<1x256xf32>
      %c0_19 = arith.constant 0 : index
      %c0_20 = arith.constant 0 : index
      %c0_21 = arith.constant 0 : index
      %25 = vector.load %arg4[%c0_19, %c0_20, %c0_21] : memref<1x2x256xf32, #tpu.memory_space<vmem>>, vector<1x1x256xf32>
      %26 = vector.shape_cast %25 : vector<1x1x256xf32> to vector<1x256xf32>
      %27 = vector.shape_cast %21 : vector<1x256xf32> to vector<1x1x256xf32>
      tpu.vector_store %arg4[%c0_19, %c0_20, %c0_21], %27 {strides = array<i32>} : memref<1x2x256xf32, #tpu.memory_space<vmem>>, vector<1x1x256xf32>,
      %c0_22 = arith.constant 0 : index
      %c1 = arith.constant 1 : index
      %c0_23 = arith.constant 0 : index
      %28 = vector.load %arg4[%c0_22, %c1, %c0_23] : memref<1x2x256xf32, #tpu.memory_space<vmem>>, vector<1x1x256xf32>
      %29 = vector.shape_cast %28 : vector<1x1x256xf32> to vector<1x256xf32>
      %30 = vector.shape_cast %24 : vector<1x256xf32> to vector<1x1x256xf32>
      tpu.vector_store %arg4[%c0_22, %c1, %c0_23], %30 {strides = array<i32>} : memref<1x2x256xf32, #tpu.memory_space<vmem>>, vector<1x1x256xf32>,
    } else {
    }
    return
  }
  func.func @transform_0(%arg0: i32, %arg1: i32, %arg2: i32) -> (i32, i32, i32) {
    %c0_i32 = arith.constant 0 : i32
    return %arg0, %arg2, %arg1 : i32, i32, i32
  }
  func.func @transform_1(%arg0: i32, %arg1: i32, %arg2: i32) -> (i32, i32, i32) {
    %c0_i32 = arith.constant 0 : i32
    %c0_i32_0 = arith.constant 0 : i32
    return %arg0, %c0_i32, %arg1 : i32, i32, i32
  }
}

</mosaic_0001>

<llo_original>
// kernel: tpu_custom_call.1
$region0: #{tpu_custom_call.1}
  #allocation0 [shape = 'u32[]', space=smem, size = 0x4, offset = 0x4, fixed_abs, tag = 'smem constant byte address 0x4 - core index']
  #allocation1 [shape = 'u32[72,128]{1,0:T(1,128)}', space=vmem, size = 0x9000, scoped, tag = 'internal scratch']
  #allocation2 [shape = 'f32[4,256]{1,0:T(4,128)}', space=vmem, size = 0x1000, scoped, tag = 'scratch operand']
  #allocation3 [shape = 'f32[4,256]{1,0:T(4,128)}', space=vmem, size = 0x1000, scoped, tag = 'scratch operand']
  %s0 = inlined_call_operand.hbm [shape: f32[2,4,256], index: 0, kind: input, shape index: {}]
  %s1 = inlined_call_operand.hbm [shape: f32[2,2,256], index: 1, kind: output, shape index: {}]
  %s2 = sld [smem:[#allocation0]]
  $region49: #{tpu_custom_call.1} parent=0
    _
  %s4 = ssub.s32 1, %s2
  %s5 = scalar_select 0, %s4, %s2
  $region1: #{tpu_custom_call.1} parent=0
    #allocation4 [shape = 'u8[8192]{0}', space=vmem, size = 0x2000, scoped, tag = 'input window, operand 0']
    #allocation5 [shape = 's32[2]{0}', space=sflag, size = 0x8, scoped, tag = 'scoped memory for tpu_custom_call.1']
    #allocation6 [shape = 's32[2]{0}', space=sflag, size = 0x8, scoped, tag = 'scoped memory for tpu_custom_call.1']
    #allocation7 [shape = 'u8[4096]{0}', space=vmem, size = 0x1000, scoped, tag = 'output window, operand 0']
    %6 = vsyncpa [#allocation5], 0
    %s7 = scalar_lea.sflag [#allocation5], 1
    %8 = vsyncpa %s7, 0
    %9 = vsyncpa [#allocation6], 0
    %s10 = scalar_lea.sflag [#allocation6], 1
    %11 = vsyncpa %s10, 0
    loop: start=0, step=1, limit=4
    $region2: #{tpu_custom_call.1} parent=1 // loop_pre_header
      _
    $region3: #{tpu_custom_call.1} parent=1 // loop_header
      %s13 = sphi 0, %s17
      %p14 = scmp.ge.s32.totalorder %s13, 4
      %s20 = sphi 0, %s39
      %s21 = sphi 0, %s35
      %s22 = sphi 0, %s31
      %s23 = sphi 0, %s20
      %s24 = sphi 0, %s21
      %s25 = sphi 0, %s22
      %s26 = sphi 0, %s23
      %s27 = sphi 0, %s24
      %s28 = sphi 0, %s25
      %s46 = sphi 0, %s48
      %s49 = sphi 0, %s46
      %s50 = sphi 0, %s49
      %s66 = sphi 0, %s50
      %s74 = sphi 0, %s76
      %s77 = sphi 0, %s74
      %s78 = sphi 0, %s77
      %s94 = sphi 0, %s78
    $region4: #{tpu_custom_call.1} parent=1 // loop_header_branch
      %16 = sbr.rel (%p14) target = $region8
    $region5: #{tpu_custom_call.1} parent=1 // loop_body
      %s18 = ssub.s32 %s13, 1
      %s19 = ssub.s32 %s13, 2
      %s29 = sadd.s32 1, %s22
      %p30 = scmp.ge.s32.totalorder %s29, 1
      %s31 = scalar_select %p30, 0, %s29
      %s32 = sadd.s32 1, %s21
      %s33 = scalar_select %p30, %s32, %s21
      %p34 = scmp.ge.s32.totalorder %s33, 1
      %s35 = scalar_select %p34, 0, %s33
      %s36 = sadd.s32 1, %s20
      %s37 = scalar_select %p34, %s36, %s20
      %p38 = scmp.ge.s32.totalorder %s37, 2
      %s39 = scalar_select %p38, 0, %s37
      %s40 = ssub.s32 %s20, %s39
      %s41 = ssub.s32 %s22, %s31
      %s42 = sor.u32 %s40, %s41
      %s43 = ssub.s32 %s21, %s35
      %s44 = sor.u32 %s42, %s43
      %p45 = scmp.eq.s32.totalorder %s44, 0
      %s47 = sadd.s32 %s46, 1
      %s48 = scalar_select %p45, %s46, %s47
      %p51 = pneg %p45
      %p52 = scmp.eq.s32.totalorder %s13, 1
      %p53 = por %p51, %p52
      %p54 = scmp.ne.s32.totalorder %s46, %s49
      %p55 = scmp.eq.s32.totalorder %s13, 0
      %p56 = por %p54, %p55
      %p57 = scmp.ne.s32.totalorder %s46, %s49
      %p58 = scmp.eq.s32.totalorder %s18, 1
      %p59 = por %p57, %p58
      %p60 = scmp.ne.s32.totalorder %s49, %s50
      %p61 = scmp.eq.s32.totalorder %s18, 0
      %p62 = por %p60, %p61
      %p63 = scmp.ne.s32.totalorder %s49, %s50
      %p64 = scmp.eq.s32.totalorder %s19, 1
      %p65 = por %p63, %p64
      %p67 = scmp.ne.s32.totalorder %s50, %s66
      %p68 = scmp.eq.s32.totalorder %s19, 0
      %p69 = por %p67, %p68
      %s70 = ssub.s32 %s20, %s39
      %s71 = ssub.s32 %s21, %s35
      %s72 = sor.u32 %s70, %s71
      %p73 = scmp.eq.s32.totalorder %s72, 0
      %s75 = sadd.s32 %s74, 1
      %s76 = scalar_select %p73, %s74, %s75
      %p79 = pneg %p73
      %p80 = scmp.eq.s32.totalorder %s13, 1
      %p81 = por %p79, %p80
      %p82 = scmp.ne.s32.totalorder %s74, %s77
      %p83 = scmp.eq.s32.totalorder %s13, 0
      %p84 = por %p82, %p83
      %p85 = scmp.ne.s32.totalorder %s74, %s77
      %p86 = scmp.eq.s32.totalorder %s18, 1
      %p87 = por %p85, %p86
      %p88 = scmp.ne.s32.totalorder %s77, %s78
      %p89 = scmp.eq.s32.totalorder %s18, 0
      %p90 = por %p88, %p89
      %p91 = scmp.ne.s32.totalorder %s77, %s78
      %p92 = scmp.eq.s32.totalorder %s19, 1
      %p93 = por %p91, %p92
      %p95 = scmp.ne.s32.totalorder %s78, %s94
      %p96 = scmp.eq.s32.totalorder %s19, 0
      %p97 = por %p95, %p96
      %p98 = scmp.le.s32.totalorder 1, %s13
      %p99 = scmp.lt.s32.totalorder %s13, 3
      %p100 = pnand %p98, %p99
      %p101 = pneg %p100
      // Predicated region
      $region9: #{tpu_custom_call.1} parent=5 // pred_check
        _
      $region10: #{tpu_custom_call.1} parent=5 // pred_check_branch
        %103 = sbr.rel (%p100) target = $region12
      $region11: #{tpu_custom_call.1} parent=5 // pred_region
        %s104 = ssub.s32 %s13, 1
      $region12: #{tpu_custom_call.1} parent=5 // pred_fallthru
        _
      %p105 = scmp.lt.s32.totalorder %s13, 2
      // Predicated region
      $region13: #{tpu_custom_call.1} parent=5 // pred_check
        %p106 = pneg %p105
      $region14: #{tpu_custom_call.1} parent=5 // pred_check_branch
        %108 = sbr.rel (%p106) target = $region16
      $region15: #{tpu_custom_call.1} parent=5 // pred_region
        // Predicated region
        $region17: #{tpu_custom_call.1} parent=15 // pred_check
          %p109 = pneg %p56
        $region18: #{tpu_custom_call.1} parent=15 // pred_check_branch
          %111 = sbr.rel (%p109) target = $region20
        $region19: #{tpu_custom_call.1} parent=15 // pred_region
          %s112 = sand.u32 %s46, 1
          %s113 = scalar_lea.sflag [#allocation5], %s112
          %s114 = sand.u32 %s46, 1
          %s115 = smul.addr %s114, 8
          %s116 = scalar_lea.vmem [#allocation4], %s115
          %s117 = smul.u32 2, %s21
          %119 = vsyncadd %s113, 0
          %s120 = smul.addr %s22, 2
          %s121 = sadd.s32 %s117, %s120
          %s122 = smul.addr %s20, 2
          %s123 = sadd.s32 %s121, %s122
          %s124 = smul.addr %s123, 4
          %s125 = scalar_lea.hbm %s0, %s124
          %s127 = sshll.u32 %s125, 4
          %s128 = int_to_ptr.hbm [resolvable:$true] %s127
          %s129 = sshll.u32 %s116, 4
          %s130 = int_to_ptr.vmem [resolvable:$true] %s129
          %132 = dma.hbm_to_vmem [thread:$0]  %s128, 128, %s130, %s113
        $region20: #{tpu_custom_call.1} parent=15 // pred_fallthru
          _
      $region16: #{tpu_custom_call.1} parent=5 // pred_fallthru
        _
      %p133 = scmp.le.s32.totalorder 1, %s13
      %p134 = scmp.lt.s32.totalorder %s13, 3
      %p135 = pnand %p133, %p134
      %p136 = pneg %p135
      // Predicated region
      $region21: #{tpu_custom_call.1} parent=5 // pred_check
        _
      $region22: #{tpu_custom_call.1} parent=5 // pred_check_branch
        %138 = sbr.rel (%p135) target = $region24
      $region23: #{tpu_custom_call.1} parent=5 // pred_region
        %s139 = ssub.s32 %s13, 1
        %s140 = sand.u32 %s49, 1
        %s141 = scalar_lea.sflag [#allocation5], %s140
        %s142 = sand.u32 %s49, 1
        %s143 = smul.addr %s142, 8
        %s144 = scalar_lea.vmem [#allocation4], %s143
        // Predicated region
        $region25: #{tpu_custom_call.1} parent=23 // pred_check
          %p145 = pneg %p62
        $region26: #{tpu_custom_call.1} parent=23 // pred_check_branch
          %147 = sbr.rel (%p145) target = $region28
        $region27: #{tpu_custom_call.1} parent=23 // pred_region
          %149 = dma.done %s141, 128
        $region28: #{tpu_custom_call.1} parent=23 // pred_fallthru
          _
        %s150 = sand.u32 %s49, 1
        %s151 = scalar_lea.sflag [#allocation5], %s150
        %s152 = sand.u32 %s49, 1
        %s153 = smul.addr %s152, 8
        %s154 = scalar_lea.vmem [#allocation4], %s153
        %p155 = pneg %p62
        %p156 = pneg %p59
        %p157 = pneg %p90
        %p158 = pneg %p87
        %s159 = sand.u32 %s77, 1
        %s160 = scalar_lea.sflag [#allocation6], %s159
        %s161 = sand.u32 %s77, 1
        %s162 = smul.addr %s161, 4
        %s163 = scalar_lea.vmem [#allocation7], %s162
        %s164 = smul.u32 2, %s24
        %s165 = smul.u32 2, %s24
        %p166 = scmp.eq.s32.totalorder %s25, 0
        // Predicated region
        $region29: #{tpu_custom_call.1} parent=23 // pred_check
          %p167 = pneg %p166
        $region30: #{tpu_custom_call.1} parent=23 // pred_check_branch
          %169 = sbr.rel (%p167) target = $region32
        $region31: #{tpu_custom_call.1} parent=23 // pred_region
          %170 = vst [vmem:[#allocation2] sm:$0xff] 0.0
          %171 = vst [vmem:[#allocation3] sm:$0xff] -inf
        $region32: #{tpu_custom_call.1} parent=23 // pred_fallthru
          _
        %v172 = vld [vmem:[#allocation2] sm:$0xff]
        %v173 = vld [vmem:[#allocation3] sm:$0xff]
        %s174 = smul.u32 0, 2
        %s175 = smul.addr %s174, 4
        %s176 = scalar_lea.vmem %s144, %s175 [#allocation4]
        %v177 = vld [vmem:[%s176] sm:$0xff]
        %v178 = vadd.f32 %v172, %v177
        %v179 = vmax.f32 %v173, %v177
        %180 = vst [vmem:[#allocation2] sm:$0xff] %v178
        %181 = vst [vmem:[#allocation3] sm:$0xff] %v179
        // Predicated region
        $region33: #{tpu_custom_call.1} parent=23 // pred_check
          %p182 = pneg %p166
        $region34: #{tpu_custom_call.1} parent=23 // pred_check_branch
          %184 = sbr.rel (%p182) target = $region36
        $region35: #{tpu_custom_call.1} parent=23 // pred_region
          %v185 = vld [vmem:[#allocation2] sm:$0xff]
          %187 = vst [vmem:[#allocation1] ss:$2 sm:$0xff] %v185
          %v188 = vld.sshfl [vmem:[#allocation1] sm:$0xff pattern:$0x75316420]
          %v189 = vld.sshfl [vmem:[#allocation1 + $0x8] sm:$0xff pattern:$0x75316420]
          %vm192 = vcmask 1043456
          %v193 = vsel %vm192, %v188, 0.0
          %v194 = vrot.slane %v193, 4
          %v195 = vadd.f32 %v193, %v194
          %v196 = vrot.slane %v195, 2
          %v197 = vadd.f32 %v195, %v196
          %v198 = vrot.slane %v197, 1
          %v199 = vadd.f32 %v197, %v198
          %v200 = vsel %vm192, %v189, 0.0
          %v201 = vrot.slane %v200, 4
          %v202 = vadd.f32 %v200, %v201
          %v203 = vrot.slane %v202, 2
          %v204 = vadd.f32 %v202, %v203
          %v205 = vrot.slane %v204, 1
          %v206 = vadd.f32 %v204, %v205
          %v207 = vmul.f32 %v199, 0.25
          %v208 = vmul.f32 %v206, 0.25
          %v209 = vld [vmem:[#allocation3] sm:$0xff]
          %211 = vst [vmem:[#allocation1] ss:$2 sm:$0xff] %v209
          %v212 = vld.sshfl [vmem:[#allocation1] sm:$0xff pattern:$0x75316420]
          %v213 = vld.sshfl [vmem:[#allocation1 + $0x8] sm:$0xff pattern:$0x75316420]
          %v216 = vsel %vm192, %v212, -inf
          %v217 = vrot.slane %v216, 4
          %v218 = vmax.f32 %v216, %v217
          %v219 = vrot.slane %v218, 2
          %v220 = vmax.f32 %v218, %v219
          %v221 = vrot.slane %v220, 1
          %v222 = vmax.f32 %v220, %v221
          %v223 = vsel %vm192, %v213, -inf
          %v224 = vrot.slane %v223, 4
          %v225 = vmax.f32 %v223, %v224
          %v226 = vrot.slane %v225, 2
          %v227 = vmax.f32 %v225, %v226
          %v228 = vrot.slane %v227, 1
          %v229 = vmax.f32 %v227, %v228
          %v232 = vrot.slane %v208, 7
          %vm233 = vcmask 1040384
          %v234 = vsel %vm233, %v207, %v232
          %v236 = vlaneseq
          %vm237 = vcmp.ge.s32.totalorder %v236, 0
          %vm238 = vcmp.lt.s32.totalorder %v236, 256
          %vm239 = vmand %vm237, %vm238
          %240 = vst.msk [vmem:[%s163] ss:$2 sm:$0x3] %vm239, %v234
          %v243 = vrot.slane %v229, 7
          %v244 = vsel %vm233, %v222, %v243
          %s246 = scalar_lea.vmem %s163, 1 [#allocation7]
          %247 = vst.msk [vmem:[%s246] ss:$2 sm:$0x3] %vm239, %v244
        $region36: #{tpu_custom_call.1} parent=23 // pred_fallthru
          _
        %s248 = sand.u32 %s77, 1
        %s249 = scalar_lea.sflag [#allocation6], %s248
        %s250 = sand.u32 %s77, 1
        %s251 = smul.addr %s250, 4
        %s252 = scalar_lea.vmem [#allocation7], %s251
        // Predicated region
        $region37: #{tpu_custom_call.1} parent=23 // pred_check
          %p253 = pneg %p87
        $region38: #{tpu_custom_call.1} parent=23 // pred_check_branch
          %255 = sbr.rel (%p253) target = $region40
        $region39: #{tpu_custom_call.1} parent=23 // pred_region
          %s256 = smul.u32 2, %s24
          %258 = vsyncadd %s249, 0
          %s259 = smul.addr %s23, 2
          %s260 = sadd.s32 %s256, %s259
          %s261 = smul.addr %s260, 2
          %s262 = scalar_lea.hbm %s1, %s261
          %s264 = sshll.u32 %s252, 4
          %s265 = int_to_ptr.vmem [resolvable:$true] %s264
          %s266 = sshll.u32 %s262, 4
          %s267 = int_to_ptr.hbm [resolvable:$true] %s266
          %269 = dma.vmem_to_hbm [thread:$0]  %s265, 64, %s267, %s249
        $region40: #{tpu_custom_call.1} parent=23 // pred_fallthru
          _
      $region24: #{tpu_custom_call.1} parent=5 // pred_fallthru
        _
      %p270 = scmp.le.s32.totalorder 2, %s13
      // Predicated region
      $region41: #{tpu_custom_call.1} parent=5 // pred_check
        %p271 = pneg %p270
      $region42: #{tpu_custom_call.1} parent=5 // pred_check_branch
        %273 = sbr.rel (%p271) target = $region44
      $region43: #{tpu_custom_call.1} parent=5 // pred_region
        %s274 = ssub.s32 %s13, 2
        // Predicated region
        $region45: #{tpu_custom_call.1} parent=43 // pred_check
          %p275 = pneg %p93
        $region46: #{tpu_custom_call.1} parent=43 // pred_check_branch
          %277 = sbr.rel (%p275) target = $region48
        $region47: #{tpu_custom_call.1} parent=43 // pred_region
          %s278 = sand.u32 %s78, 1
          %s279 = scalar_lea.sflag [#allocation6], %s278
          %s280 = sand.u32 %s78, 1
          %s281 = smul.addr %s280, 4
          %s282 = scalar_lea.vmem [#allocation7], %s281
          %284 = dma.done %s279, 64
        $region48: #{tpu_custom_call.1} parent=43 // pred_fallthru
          _
      $region44: #{tpu_custom_call.1} parent=5 // pred_fallthru
        _
    $region6: #{tpu_custom_call.1} parent=1 // loop_footer
      %s17 = sadd.s32 1, %s13
    $region7: #{tpu_custom_call.1} parent=1 // loop_footer_branch
      %12 = sbr.rel target = $region3
    $region8: #{tpu_custom_call.1} parent=1 // loop_exit
      _
    %285 = vsyncpa [#allocation5], 1
    %s286 = scalar_lea.sflag [#allocation5], 1
    %287 = vsyncpa %s286, 1
    %288 = vsyncpa [#allocation6], 1
    %s289 = scalar_lea.sflag [#allocation6], 1
    %290 = vsyncpa %s289, 1

</llo_original>
